<compile_context>
chip_gen: v7x
topology: tpu7x:2x2x1
jax: 0.10.0
libtpu: 0.0.40
codegen_flags: <defaults>
</compile_context>

<pallas_src>
import functools

import jax
import jax.numpy as jnp
import numpy as np
from jax.experimental import pallas as pl
from jax.experimental.pallas import tpu as pltpu


def _round_up(x, m):
    return ((x + m - 1) // m) * m


# ------------------------------ fused kernel -------------------------------

def _mfvinn_fused_kernel(x_ref, *refs, num_layers):
    """refs = [wmu_0, wvar_0, bmu_0, bvar_0, eps_0, ..., (x5 per layer), o_ref]."""
    o_ref = refs[-1]
    p = refs[:-1]

    a = x_ref[...].astype(jnp.float32)
    x_bf = a.astype(jnp.bfloat16)            # activations carried in bf16
    xsq_bf = (a * a).astype(jnp.bfloat16)    # x^2 for the variance matmul

    y = None
    for l in range(num_layers):              # statically unrolled (small L)
        wmu = p[5 * l + 0][...]              # bf16 (K, N)
        wvar = p[5 * l + 1][...]             # bf16 (K, N)  = exp(log_var)
        bmu = p[5 * l + 2][...]              # f32  (1, N)
        bvar = p[5 * l + 3][...]             # f32  (1, N)
        eps = p[5 * l + 4][...]              # f32  (TM, N) ~ N(0,1)

        mean = jnp.dot(x_bf, wmu, preferred_element_type=jnp.float32) + bmu
        var = jnp.dot(xsq_bf, wvar, preferred_element_type=jnp.float32) + bvar
        y = mean + eps * jnp.sqrt(var)       # local reparameterization

        if l < num_layers - 1:               # hidden layers: ReLU
            a = jnp.maximum(y, 0.0)
            x_bf = a.astype(jnp.bfloat16)
            xsq_bf = (a * a).astype(jnp.bfloat16)

    o_ref[...] = y.astype(o_ref.dtype)


def _mfvinn_pallas_call(x_pad, flat, num_layers, tm, out_cols):
    m_pad, k0 = x_pad.shape
    grid = (m_pad // tm,)

    in_specs = [pl.BlockSpec((tm, k0), lambda i: (i, 0))]
    for idx, arr in enumerate(flat):
        if idx % 5 == 4:  # per-row eps: tiled along M like the activations
            in_specs.append(pl.BlockSpec((tm, arr.shape[1]), lambda i: (i, 0)))
        else:             # weights / biases: same block every grid step (resident)
            in_specs.append(pl.BlockSpec(arr.shape, lambda i: (0, 0)))
    out_specs = pl.BlockSpec((tm, out_cols), lambda i: (i, 0))

    # Scoped-VMEM budget: resident params + IO blocks, double-buffer headroom.
    param_bytes = sum(int(a.size) * a.dtype.itemsize for a in flat)
    io_bytes = tm * (k0 + out_cols) * 4
    vmem_bytes = int(min(max(2 * (param_bytes + io_bytes) + (16 << 20), 32 << 20),
                         100 << 20))

    return pl.pallas_call(
        functools.partial(_mfvinn_fused_kernel, num_layers=num_layers),
        grid=grid,
        in_specs=in_specs,
        out_specs=out_specs,
        out_shape=jax.ShapeDtypeStruct((m_pad, out_cols), jnp.float32),
        compiler_params=pltpu.CompilerParams(
            dimension_semantics=("parallel",),
            vmem_limit_bytes=vmem_bytes),
    )(x_pad, *flat)


# --------------------------- parameter creation ----------------------------

def _truncated_normal(key, shape, stddev=0.1):
    # truncnorm on [-2*sigma, 2*sigma], mean 0 -- matches truncated_normal().
    return stddev * jax.random.truncated_normal(key, -2.0, 2.0, shape,
                                                dtype=jnp.float32)


def init_bayesian_linear(key, dim_in, dim_out):
    k_w, k_b = jax.random.split(key)
    return {
        "weight_mu": _truncated_normal(k_w, (dim_in, dim_out), stddev=0.1),
        "weight_log_var": -6.0 * jnp.ones((dim_in, dim_out), jnp.float32),
        "bias_mu": _truncated_normal(k_b, (dim_out,), stddev=0.1),
        "bias_log_var": -6.0 * jnp.ones((dim_out,), jnp.float32),
    }


def init_mfvinn(key, dim_in, dim_out, hidden_size):
    sizes = [dim_in] + list(hidden_size) + [dim_out]
    keys = jax.random.split(key, len(sizes) - 1)
    shared = [init_bayesian_linear(keys[i], sizes[i], sizes[i + 1])
              for i in range(len(sizes) - 2)]
    head = [init_bayesian_linear(keys[-1], sizes[-2], sizes[-1])]  # one task head
    return {"layers": shared, "last_layers": head, "sizes": sizes}


# ------------------------------- forward -----------------------------------

def _pad2(a, rows, cols):
    return jnp.pad(a, ((0, rows - a.shape[0]), (0, cols - a.shape[1])))


def prepare_params(params, task_idx):
    """Pad & pre-cast (mu, var) of every layer; cacheable across MC samples.

    Output/lane dims are padded to 128 (lane-dense, unmasked stores); only the
    very first contraction dim (dim_in) is padded to 16 (bf16 sublane).  Padded
    entries have mu = var = 0, so padding contributes exactly nothing.
    """
    sizes = params["sizes"]
    psizes = [_round_up(sizes[0], 16)] + [_round_up(s, 128) for s in sizes[1:]]
    all_layers = params["layers"] + [params["last_layers"][task_idx]]
    layers = []
    for i, layer in enumerate(all_layers):
        dpi, dpo = psizes[i], psizes[i + 1]
        wmu = _pad2(layer["weight_mu"], dpi, dpo).astype(jnp.bfloat16)
        wvar = _pad2(jnp.exp(layer["weight_log_var"]), dpi, dpo).astype(jnp.bfloat16)
        bmu = _pad2(layer["bias_mu"].reshape(1, -1), 1, dpo).astype(jnp.float32)
        bvar = _pad2(jnp.exp(layer["bias_log_var"]).reshape(1, -1), 1, dpo
                     ).astype(jnp.float32)
        layers.append((wmu, wvar, bmu, bvar))
    return layers, psizes


def _build_kernel_inputs(params, inputs, task_idx, key, n_samples):
    dim_in = params["sizes"][0]
    num_layers = len(params["sizes"]) - 1
    x = inputs.reshape(-1, dim_in).astype(jnp.float32)
    batch = x.shape[0]

    layers, psizes = prepare_params(params, task_idx)

    # Monte-Carlo samples stacked into the M (row) dimension.
    m = batch * n_samples
    m8 = _round_up(m, 8)
    if m8 >= 256:
        tm = 128
        m_pad = _round_up(m8, tm)
    else:
        tm = m8
        m_pad = m8

    x_rep = jnp.tile(x, (n_samples, 1)) if n_samples > 1 else x
    x_pad = jnp.pad(x_rep, ((0, m_pad - m), (0, psizes[0] - dim_in)))

    keys = jax.random.split(key, num_layers)
    flat = []
    for l in range(num_layers):
        wmu, wvar, bmu, bvar = layers[l]
        eps = jax.random.normal(keys[l], (m_pad, psizes[l + 1]), dtype=jnp.float32)
        flat.extend([wmu, wvar, bmu, bvar, eps])

    meta = dict(batch=batch, m=m, tm=tm, num_layers=num_layers,
                out_cols=psizes[-1], dim_out=params["sizes"][-1])
    return x_pad, flat, meta


def mfvinn_forward(params, inputs, task_idx, key, n_samples=1):
    """Equivalent of MFVINN.forward(inputs, task_idx) with fresh N(0,1) noise.

    n_samples > 1 stacks Monte-Carlo samples into the row dimension of one
    kernel call (weights/variances are shared across samples).
    """
    x_pad, flat, meta = _build_kernel_inputs(params, inputs, task_idx, key,
                                             n_samples)
    out_pad = _mfvinn_pallas_call(x_pad, flat, meta["num_layers"], meta["tm"],
                                  meta["out_cols"])
    out = out_pad[:meta["m"], :meta["dim_out"]]
    if n_samples > 1:
        out = out.reshape(n_samples, meta["batch"], meta["dim_out"])
    return out


# Pure-JAX reference (same math, no Pallas) for self-checking.
def _reference_forward(x_pad, flat, num_layers):
    a = x_pad.astype(jnp.float32)
    xb = a.astype(jnp.bfloat16)
    xs = (a * a).astype(jnp.bfloat16)
    y = None
    for l in range(num_layers):
        wmu, wvar, bmu, bvar, eps = flat[5 * l:5 * l + 5]
        mean = jnp.dot(xb, wmu, preferred_element_type=jnp.float32) + bmu
        var = jnp.dot(xs, wvar, preferred_element_type=jnp.float32) + bvar
        y = mean + eps * jnp.sqrt(var)
        if l < num_layers - 1:
            a = jnp.maximum(y, 0.0)
            xb = a.astype(jnp.bfloat16)
            xs = (a * a).astype(jnp.bfloat16)
    return y


if __name__ == "__main__":
    key = jax.random.PRNGKey(0)
    k_param, k_input, k_noise, k_noise2 = jax.random.split(key, 4)

    # Small shapes consistent with the module: dim_in=32, one hidden layer of
    # 64, dim_out=10, batch of 8 examples given as (8, 4, 8) and flattened.
    dim_in, hidden_size, dim_out = 32, [64], 10
    params = init_mfvinn(k_param, dim_in, dim_out, hidden_size)

    inputs = jax.random.normal(k_input, (8, 4, 8), jnp.float32)  # view -> (8, 32)

    # Single-sample forward + self-check against the pure-JAX reference.
    x_pad, flat, meta = _build_kernel_inputs(params, inputs, 0, k_noise, 1)
    out_pad = _mfvinn_pallas_call(x_pad, flat, meta["num_layers"], meta["tm"],
                                  meta["out_cols"])
    out_pad = jax.block_until_ready(out_pad)
    out = out_pad[:meta["m"], :dim_out]
    ref = _reference_forward(x_pad, flat, meta["num_layers"])[:meta["m"], :dim_out]

    assert out.shape == (8, dim_out), out.shape
    assert bool(jnp.all(jnp.isfinite(out)))
    np.testing.assert_allclose(np.asarray(out), np.asarray(ref),
                               rtol=1e-2, atol=1e-2)

    # Monte-Carlo batched forward (samples stacked into rows of one call).
    out_mc = mfvinn_forward(params, inputs, task_idx=0, key=k_noise2, n_samples=4)
    out_mc = jax.block_until_ready(out_mc)
    assert out_mc.shape == (4, 8, dim_out), out_mc.shape
    assert bool(jnp.all(jnp.isfinite(out_mc)))

    print("KERNEL_OK")
</pallas_src>

<mosaic_0001>
module attributes {stable_mosaic.version = 11 : i64} {
  func.func @_mfvinn_fused_kernel(%arg0: i32, %arg1: memref<8x32xf32, #tpu.memory_space<vmem>>, %arg2: memref<32x128xbf16, #tpu.memory_space<vmem>>, %arg3: memref<32x128xbf16, #tpu.memory_space<vmem>>, %arg4: memref<1x128xf32, #tpu.memory_space<vmem>>, %arg5: memref<1x128xf32, #tpu.memory_space<vmem>>, %arg6: memref<8x128xf32, #tpu.memory_space<vmem>>, %arg7: memref<128x128xbf16, #tpu.memory_space<vmem>>, %arg8: memref<128x128xbf16, #tpu.memory_space<vmem>>, %arg9: memref<1x128xf32, #tpu.memory_space<vmem>>, %arg10: memref<1x128xf32, #tpu.memory_space<vmem>>, %arg11: memref<8x128xf32, #tpu.memory_space<vmem>>, %arg12: memref<8x128xf32, #tpu.memory_space<vmem>>) attributes {dimension_semantics = [#tpu.dimension_semantics<parallel>], iteration_bounds = array<i64: 1>, scalar_prefetch = 0 : i64, scratch_operands = 0 : i64, tpu.core_type = #tpu.core_type<tc>, window_params = [{transform_indices = @transform_0, window_bounds = array<i64: 8, 32>}, {pipeline_mode = #tpu.pipeline_mode<synchronous>, transform_indices = @transform_1, window_bounds = array<i64: 32, 128>}, {pipeline_mode = #tpu.pipeline_mode<synchronous>, transform_indices = @transform_2, window_bounds = array<i64: 32, 128>}, {pipeline_mode = #tpu.pipeline_mode<synchronous>, transform_indices = @transform_3, window_bounds = array<i64: 1, 128>}, {pipeline_mode = #tpu.pipeline_mode<synchronous>, transform_indices = @transform_4, window_bounds = array<i64: 1, 128>}, {transform_indices = @transform_5, window_bounds = array<i64: 8, 128>}, {pipeline_mode = #tpu.pipeline_mode<synchronous>, transform_indices = @transform_6, window_bounds = array<i64: 128, 128>}, {pipeline_mode = #tpu.pipeline_mode<synchronous>, transform_indices = @transform_7, window_bounds = array<i64: 128, 128>}, {pipeline_mode = #tpu.pipeline_mode<synchronous>, transform_indices = @transform_8, window_bounds = array<i64: 1, 128>}, {pipeline_mode = #tpu.pipeline_mode<synchronous>, transform_indices = @transform_9, window_bounds = array<i64: 1, 128>}, {transform_indices = @transform_10, window_bounds = array<i64: 8, 128>}, {transform_indices = @transform_11, window_bounds = array<i64: 8, 128>}]} {
    %c0 = arith.constant 0 : index
    %c0_0 = arith.constant 0 : index
    %0 = vector.load %arg1[%c0, %c0_0] : memref<8x32xf32, #tpu.memory_space<vmem>>, vector<8x32xf32>
    %1 = arith.truncf %0 : vector<8x32xf32> to vector<8x32xbf16>
    %2 = arith.mulf %0, %0 : vector<8x32xf32>
    %3 = arith.truncf %2 : vector<8x32xf32> to vector<8x32xbf16>
    %c0_1 = arith.constant 0 : index
    %c0_2 = arith.constant 0 : index
    %4 = vector.load %arg2[%c0_1, %c0_2] : memref<32x128xbf16, #tpu.memory_space<vmem>>, vector<32x128xbf16>
    %c0_3 = arith.constant 0 : index
    %c0_4 = arith.constant 0 : index
    %5 = vector.load %arg3[%c0_3, %c0_4] : memref<32x128xbf16, #tpu.memory_space<vmem>>, vector<32x128xbf16>
    %c0_5 = arith.constant 0 : index
    %c0_6 = arith.constant 0 : index
    %6 = vector.load %arg4[%c0_5, %c0_6] : memref<1x128xf32, #tpu.memory_space<vmem>>, vector<1x128xf32>
    %c0_7 = arith.constant 0 : index
    %c0_8 = arith.constant 0 : index
    %7 = vector.load %arg5[%c0_7, %c0_8] : memref<1x128xf32, #tpu.memory_space<vmem>>, vector<1x128xf32>
    %c0_9 = arith.constant 0 : index
    %c0_10 = arith.constant 0 : index
    %8 = vector.load %arg6[%c0_9, %c0_10] : memref<8x128xf32, #tpu.memory_space<vmem>>, vector<8x128xf32>
    %cst = arith.constant dense<0.000000e+00> : vector<8x128xf32>
    %9 = tpu.matmul %1, %4, %cst {dimension_numbers = #tpu.dot_dimension_numbers<[1], [0], [0], [1], [0, 0, 1, 1], [], []>} : vector<8x32xbf16>, vector<32x128xbf16>, vector<8x128xf32> -> vector<8x128xf32>
    %10 = vector.broadcast %6 : vector<1x128xf32> to vector<8x128xf32>
    %11 = arith.addf %9, %10 : vector<8x128xf32>
    %cst_11 = arith.constant dense<0.000000e+00> : vector<8x128xf32>
    %12 = tpu.matmul %3, %5, %cst_11 {dimension_numbers = #tpu.dot_dimension_numbers<[1], [0], [0], [1], [0, 0, 1, 1], [], []>} : vector<8x32xbf16>, vector<32x128xbf16>, vector<8x128xf32> -> vector<8x128xf32>
    %13 = vector.broadcast %7 : vector<1x128xf32> to vector<8x128xf32>
    %14 = arith.addf %12, %13 : vector<8x128xf32>
    %15 = math.sqrt %14 : vector<8x128xf32>
    %16 = arith.mulf %8, %15 : vector<8x128xf32>
    %17 = arith.addf %11, %16 : vector<8x128xf32>
    %cst_12 = arith.constant 0.000000e+00 : f32
    %18 = vector.broadcast %cst_12 : f32 to vector<8x128xf32>
    %19 = arith.maximumf %17, %18 : vector<8x128xf32>
    %20 = arith.truncf %19 : vector<8x128xf32> to vector<8x128xbf16>
    %21 = arith.mulf %19, %19 : vector<8x128xf32>
    %22 = arith.truncf %21 : vector<8x128xf32> to vector<8x128xbf16>
    %c0_13 = arith.constant 0 : index
    %c0_14 = arith.constant 0 : index
    %23 = vector.load %arg7[%c0_13, %c0_14] : memref<128x128xbf16, #tpu.memory_space<vmem>>, vector<128x128xbf16>
    %c0_15 = arith.constant 0 : index
    %c0_16 = arith.constant 0 : index
    %24 = vector.load %arg8[%c0_15, %c0_16] : memref<128x128xbf16, #tpu.memory_space<vmem>>, vector<128x128xbf16>
    %c0_17 = arith.constant 0 : index
    %c0_18 = arith.constant 0 : index
    %25 = vector.load %arg9[%c0_17, %c0_18] : memref<1x128xf32, #tpu.memory_space<vmem>>, vector<1x128xf32>
    %c0_19 = arith.constant 0 : index
    %c0_20 = arith.constant 0 : index
    %26 = vector.load %arg10[%c0_19, %c0_20] : memref<1x128xf32, #tpu.memory_space<vmem>>, vector<1x128xf32>
    %c0_21 = arith.constant 0 : index
    %c0_22 = arith.constant 0 : index
    %27 = vector.load %arg11[%c0_21, %c0_22] : memref<8x128xf32, #tpu.memory_space<vmem>>, vector<8x128xf32>
    %cst_23 = arith.constant dense<0.000000e+00> : vector<8x128xf32>
    %28 = tpu.matmul %20, %23, %cst_23 {dimension_numbers = #tpu.dot_dimension_numbers<[1], [0], [0], [1], [0, 0, 1, 1], [], []>} : vector<8x128xbf16>, vector<128x128xbf16>, vector<8x128xf32> -> vector<8x128xf32>
    %29 = vector.broadcast %25 : vector<1x128xf32> to vector<8x128xf32>
    %30 = arith.addf %28, %29 : vector<8x128xf32>
    %cst_24 = arith.constant dense<0.000000e+00> : vector<8x128xf32>
    %31 = tpu.matmul %22, %24, %cst_24 {dimension_numbers = #tpu.dot_dimension_numbers<[1], [0], [0], [1], [0, 0, 1, 1], [], []>} : vector<8x128xbf16>, vector<128x128xbf16>, vector<8x128xf32> -> vector<8x128xf32>
    %32 = vector.broadcast %26 : vector<1x128xf32> to vector<8x128xf32>
    %33 = arith.addf %31, %32 : vector<8x128xf32>
    %34 = math.sqrt %33 : vector<8x128xf32>
    %35 = arith.mulf %27, %34 : vector<8x128xf32>
    %36 = arith.addf %30, %35 : vector<8x128xf32>
    %c0_25 = arith.constant 0 : index
    %c0_26 = arith.constant 0 : index
    %37 = vector.load %arg12[%c0_25, %c0_26] : memref<8x128xf32, #tpu.memory_space<vmem>>, vector<8x128xf32>
    tpu.vector_store %arg12[%c0_25, %c0_26], %36 {strides = array<i32>} : memref<8x128xf32, #tpu.memory_space<vmem>>, vector<8x128xf32>,
    return
  }
  func.func @transform_0(%arg0: i32) -> (i32, i32) {
    %c0_i32 = arith.constant 0 : i32
    %c0_i32_0 = arith.constant 0 : i32
    return %arg0, %c0_i32 : i32, i32
  }
  func.func @transform_1(%arg0: i32) -> (i32, i32) {
    %c0_i32 = arith.constant 0 : i32
    %c0_i32_0 = arith.constant 0 : i32
    %c0_i32_1 = arith.constant 0 : i32
    return %c0_i32, %c0_i32_0 : i32, i32
  }
  func.func @transform_2(%arg0: i32) -> (i32, i32) {
    %c0_i32 = arith.constant 0 : i32
    %c0_i32_0 = arith.constant 0 : i32
    %c0_i32_1 = arith.constant 0 : i32
    return %c0_i32, %c0_i32_0 : i32, i32
  }
  func.func @transform_3(%arg0: i32) -> (i32, i32) {
    %c0_i32 = arith.constant 0 : i32
    %c0_i32_0 = arith.constant 0 : i32
    %c0_i32_1 = arith.constant 0 : i32
    return %c0_i32, %c0_i32_0 : i32, i32
  }
  func.func @transform_4(%arg0: i32) -> (i32, i32) {
    %c0_i32 = arith.constant 0 : i32
    %c0_i32_0 = arith.constant 0 : i32
    %c0_i32_1 = arith.constant 0 : i32
    return %c0_i32, %c0_i32_0 : i32, i32
  }
  func.func @transform_5(%arg0: i32) -> (i32, i32) {
    %c0_i32 = arith.constant 0 : i32
    %c0_i32_0 = arith.constant 0 : i32
    return %arg0, %c0_i32 : i32, i32
  }
  func.func @transform_6(%arg0: i32) -> (i32, i32) {
    %c0_i32 = arith.constant 0 : i32
    %c0_i32_0 = arith.constant 0 : i32
    %c0_i32_1 = arith.constant 0 : i32
    return %c0_i32, %c0_i32_0 : i32, i32
  }
  func.func @transform_7(%arg0: i32) -> (i32, i32) {
    %c0_i32 = arith.constant 0 : i32
    %c0_i32_0 = arith.constant 0 : i32
    %c0_i32_1 = arith.constant 0 : i32
    return %c0_i32, %c0_i32_0 : i32, i32
  }
  func.func @transform_8(%arg0: i32) -> (i32, i32) {
    %c0_i32 = arith.constant 0 : i32
    %c0_i32_0 = arith.constant 0 : i32
    %c0_i32_1 = arith.constant 0 : i32
    return %c0_i32, %c0_i32_0 : i32, i32
  }
  func.func @transform_9(%arg0: i32) -> (i32, i32) {
    %c0_i32 = arith.constant 0 : i32
    %c0_i32_0 = arith.constant 0 : i32
    %c0_i32_1 = arith.constant 0 : i32
    return %c0_i32, %c0_i32_0 : i32, i32
  }
  func.func @transform_10(%arg0: i32) -> (i32, i32) {
    %c0_i32 = arith.constant 0 : i32
    %c0_i32_0 = arith.constant 0 : i32
    return %arg0, %c0_i32 : i32, i32
  }
  func.func @transform_11(%arg0: i32) -> (i32, i32) {
    %c0_i32 = arith.constant 0 : i32
    %c0_i32_0 = arith.constant 0 : i32
    return %arg0, %c0_i32 : i32, i32
  }
}

</mosaic_0001>

<llo_original>
// kernel: tpu_custom_call.1
$region0: #{tpu_custom_call.1}
  #allocation0 [shape = 'u32[]', space=smem, size = 0x4, offset = 0x4, fixed_abs, tag = 'smem constant byte address 0x4 - core index']
  #allocation1 [shape = 'u32[144,128]{1,0:T(1,128)}', space=vmem, size = 0x12000, scoped, tag = 'internal scratch']
  %s0 = inlined_call_operand.hbm [shape: f32[8,32], index: 0, kind: input, shape index: {}]
  %s1 = inlined_call_operand.hbm [shape: bf16[32,128], index: 1, kind: input, shape index: {}]
  %s2 = inlined_call_operand.hbm [shape: bf16[32,128], index: 2, kind: input, shape index: {}]
  %s3 = inlined_call_operand.vmem [shape: f32[1,128], index: 3, kind: input, shape index: {}]
  %s4 = inlined_call_operand.vmem [shape: f32[1,128], index: 4, kind: input, shape index: {}]
  %s5 = inlined_call_operand.vmem [shape: f32[8,128], index: 5, kind: input, shape index: {}]
  %s6 = inlined_call_operand.hbm [shape: bf16[128,128], index: 6, kind: input, shape index: {}]
  %s7 = inlined_call_operand.hbm [shape: bf16[128,128], index: 7, kind: input, shape index: {}]
  %s8 = inlined_call_operand.vmem [shape: f32[1,128], index: 8, kind: input, shape index: {}]
  %s9 = inlined_call_operand.vmem [shape: f32[1,128], index: 9, kind: input, shape index: {}]
  %s10 = inlined_call_operand.vmem [shape: f32[8,128], index: 10, kind: input, shape index: {}]
  %s11 = inlined_call_operand.hbm [shape: f32[8,128], index: 11, kind: output, shape index: {}]
  %s12 = sld [smem:[#allocation0]]
  $region74: #{tpu_custom_call.1} parent=0
    _
  %s14 = ssub.s32 1, %s12
  %s15 = scalar_select 0, %s14, %s12
  $region1: #{tpu_custom_call.1} parent=0
    #allocation2 [shape = 'u8[4096]{0}', space=vmem, size = 0x1000, scoped, tag = 'input window, operand 0, single buffered']
    #allocation3 [shape = 's32[1]{0}', space=sflag, size = 0x4, scoped, tag = 'scoped memory for tpu_custom_call.1']
    #allocation4 [shape = 's32[1]{0}', space=sflag, size = 0x4, scoped, tag = 'scoped memory for tpu_custom_call.1']
    #allocation5 [shape = 'u8[8192]{0}', space=vmem, size = 0x2000, scoped, tag = 'input window, operand 1, single buffered']
    #allocation6 [shape = 's32[1]{0}', space=sflag, size = 0x4, scoped, tag = 'scoped memory for tpu_custom_call.1']
    #allocation7 [shape = 'u8[8192]{0}', space=vmem, size = 0x2000, scoped, tag = 'input window, operand 2, single buffered']
    #allocation8 [shape = 'u8[32768]{0}', space=vmem, size = 0x8000, scoped, tag = 'input window, operand 6, single buffered']
    #allocation9 [shape = 's32[1]{0}', space=sflag, size = 0x4, scoped, tag = 'scoped memory for tpu_custom_call.1']
    #allocation10 [shape = 'u8[32768]{0}', space=vmem, size = 0x8000, scoped, tag = 'input window, operand 7, single buffered']
    #allocation11 [shape = 'u8[4096]{0}', space=vmem, size = 0x1000, scoped, tag = 'output window, operand 0, single buffered']
    %16 = vsyncpa [#allocation3], 0
    %17 = vsyncpa [#allocation6], 0
    %18 = vsyncpa [#allocation9], 0
    %19 = vsyncpa [#allocation4], 0
    // Predicated region
    $region2: #{tpu_custom_call.1} parent=1 // pred_check
      _
    $region3: #{tpu_custom_call.1} parent=1 // pred_check_branch
      %21 = sbr.rel (0) target = $region5
    $region4: #{tpu_custom_call.1} parent=1 // pred_region
      %s23 = ssub.s32 128, 128
      %24 = vsyncadd [#allocation3], %s23
      %s26 = sshll.u32 [#allocation2], 4
      %s27 = int_to_ptr.vmem [resolvable:$true] %s26
      %29 = dma.hbm_to_vmem [thread:$0]  %s0, 128, %s27, [#allocation3]
    $region5: #{tpu_custom_call.1} parent=1 // pred_fallthru
      _
    // Predicated region
    $region6: #{tpu_custom_call.1} parent=1 // pred_check
      _
    $region7: #{tpu_custom_call.1} parent=1 // pred_check_branch
      %31 = sbr.rel (0) target = $region9
    $region8: #{tpu_custom_call.1} parent=1 // pred_region
      %s33 = ssub.s32 256, 256
      %34 = vsyncadd [#allocation6], %s33
      %s35 = sshll.u32 [#allocation5], 4
      %s36 = int_to_ptr.vmem [resolvable:$true] %s35
      %41 = dma.hbm_to_vmem [thread:$0]  %s1, 256, %s36, [#allocation6], 64, 64, 4
    $region9: #{tpu_custom_call.1} parent=1 // pred_fallthru
      _
    // Predicated region
    $region10: #{tpu_custom_call.1} parent=1 // pred_check
      _
    $region11: #{tpu_custom_call.1} parent=1 // pred_check_branch
      %43 = sbr.rel (0) target = $region13
    $region12: #{tpu_custom_call.1} parent=1 // pred_region
      %s45 = ssub.s32 256, 256
      %46 = vsyncadd [#allocation6], %s45
      %s47 = sshll.u32 [#allocation7], 4
      %s48 = int_to_ptr.vmem [resolvable:$true] %s47
      %53 = dma.hbm_to_vmem [thread:$0]  %s2, 256, %s48, [#allocation6], 64, 64, 4
    $region13: #{tpu_custom_call.1} parent=1 // pred_fallthru
      _
    // Predicated region
    $region14: #{tpu_custom_call.1} parent=1 // pred_check
      _
    $region15: #{tpu_custom_call.1} parent=1 // pred_check_branch
      %55 = sbr.rel (0) target = $region17
    $region16: #{tpu_custom_call.1} parent=1 // pred_region
      _
    $region17: #{tpu_custom_call.1} parent=1 // pred_fallthru
      _
    // Predicated region
    $region18: #{tpu_custom_call.1} parent=1 // pred_check
      _
    $region19: #{tpu_custom_call.1} parent=1 // pred_check_branch
      %57 = sbr.rel (0) target = $region21
    $region20: #{tpu_custom_call.1} parent=1 // pred_region
      _
    $region21: #{tpu_custom_call.1} parent=1 // pred_fallthru
      _
    // Predicated region
    $region22: #{tpu_custom_call.1} parent=1 // pred_check
      _
    $region23: #{tpu_custom_call.1} parent=1 // pred_check_branch
      %59 = sbr.rel (0) target = $region25
    $region24: #{tpu_custom_call.1} parent=1 // pred_region
      _
    $region25: #{tpu_custom_call.1} parent=1 // pred_fallthru
      _
    // Predicated region
    $region26: #{tpu_custom_call.1} parent=1 // pred_check
      _
    $region27: #{tpu_custom_call.1} parent=1 // pred_check_branch
      %61 = sbr.rel (0) target = $region29
    $region28: #{tpu_custom_call.1} parent=1 // pred_region
      %s63 = ssub.s32 1024, 1024
      %64 = vsyncadd [#allocation9], %s63
      %s65 = sshll.u32 [#allocation8], 4
      %s66 = int_to_ptr.vmem [resolvable:$true] %s65
      %71 = dma.hbm_to_vmem [thread:$0]  %s6, 1024, %s66, [#allocation9], 64, 64, 4
    $region29: #{tpu_custom_call.1} parent=1 // pred_fallthru
      _
    // Predicated region
    $region30: #{tpu_custom_call.1} parent=1 // pred_check
      _
    $region31: #{tpu_custom_call.1} parent=1 // pred_check_branch
      %73 = sbr.rel (0) target = $region33
    $region32: #{tpu_custom_call.1} parent=1 // pred_region
      %s75 = ssub.s32 1024, 1024
      %76 = vsyncadd [#allocation9], %s75
      %s77 = sshll.u32 [#allocation10], 4
      %s78 = int_to_ptr.vmem [resolvable:$true] %s77
      %83 = dma.hbm_to_vmem [thread:$0]  %s7, 1024, %s78, [#allocation9], 64, 64, 4
    $region33: #{tpu_custom_call.1} parent=1 // pred_fallthru
      _
    // Predicated region
    $region34: #{tpu_custom_call.1} parent=1 // pred_check
      _
    $region35: #{tpu_custom_call.1} parent=1 // pred_check_branch
      %85 = sbr.rel (0) target = $region37
    $region36: #{tpu_custom_call.1} parent=1 // pred_region
      _
    $region37: #{tpu_custom_call.1} parent=1 // pred_fallthru
      _
    // Predicated region
    $region38: #{tpu_custom_call.1} parent=1 // pred_check
      _
    $region39: #{tpu_custom_call.1} parent=1 // pred_check_branch
      %87 = sbr.rel (0) target = $region41
    $region40: #{tpu_custom_call.1} parent=1 // pred_region
      _
    $region41: #{tpu_custom_call.1} parent=1 // pred_fallthru
      _
    // Predicated region
    $region42: #{tpu_custom_call.1} parent=1 // pred_check
      _
    $region43: #{tpu_custom_call.1} parent=1 // pred_check_branch
      %89 = sbr.rel (0) target = $region45
    $region44: #{tpu_custom_call.1} parent=1 // pred_region
      _
    $region45: #{tpu_custom_call.1} parent=1 // pred_fallthru
      _
    // Predicated region
    $region46: #{tpu_custom_call.1} parent=1 // pred_check
      _
    $region47: #{tpu_custom_call.1} parent=1 // pred_check_branch
      %91 = sbr.rel (0) target = $region49
    $region48: #{tpu_custom_call.1} parent=1 // pred_region
      %92 = dma.done [#allocation3], 128
    $region49: #{tpu_custom_call.1} parent=1 // pred_fallthru
      _
    // Predicated region
    $region50: #{tpu_custom_call.1} parent=1 // pred_check
      _
    $region51: #{tpu_custom_call.1} parent=1 // pred_check_branch
      %94 = sbr.rel (0) target = $region53
    $region52: #{tpu_custom_call.1} parent=1 // pred_region
      %95 = dma.done [#allocation6], 256
    $region53: #{tpu_custom_call.1} parent=1 // pred_fallthru
      _
    // Predicated region
    $region54: #{tpu_custom_call.1} parent=1 // pred_check
      _
    $region55: #{tpu_custom_call.1} parent=1 // pred_check_branch
      %97 = sbr.rel (0) target = $region57
    $region56: #{tpu_custom_call.1} parent=1 // pred_region
      %98 = dma.done [#allocation6], 256
    $region57: #{tpu_custom_call.1} parent=1 // pred_fallthru
      _
    // Predicated region
    $region58: #{tpu_custom_call.1} parent=1 // pred_check
      _
    $region59: #{tpu_custom_call.1} parent=1 // pred_check_branch
      %100 = sbr.rel (0) target = $region61
    $region60: #{tpu_custom_call.1} parent=1 // pred_region
      %101 = dma.done [#allocation9], 1024
    $region61: #{tpu_custom_call.1} parent=1 // pred_fallthru
      _
    // Predicated region
    $region62: #{tpu_custom_call.1} parent=1 // pred_check
      _
    $region63: #{tpu_custom_call.1} parent=1 // pred_check_branch
      %103 = sbr.rel (0) target = $region65
    $region64: #{tpu_custom_call.1} parent=1 // pred_region
      %104 = dma.done [#allocation9], 1024
    $region65: #{tpu_custom_call.1} parent=1 // pred_fallthru
      _
    %v106 = vld [vmem:[#allocation2] sm:$0xff]
    %v107 = vpack.c.bf16 %v106, %v106
    %v108 = vmul.f32 %v106, %v106
    %v109 = vpack.c.bf16 %v108, %v108
    %v110 = vld [vmem:[#allocation5] sm:$0xf]
    %v111 = vld [vmem:[#allocation5 + $0x4] sm:$0xf]
    %v112 = vld [vmem:[#allocation5 + $0x8] sm:$0xf]
    %v113 = vld [vmem:[#allocation5 + $0xc] sm:$0xf]
    %v114 = vld [vmem:[#allocation7] sm:$0xf]
    %v115 = vld [vmem:[#allocation7 + $0x4] sm:$0xf]
    %v116 = vld [vmem:[#allocation7 + $0x8] sm:$0xf]
    %v117 = vld [vmem:[#allocation7 + $0xc] sm:$0xf]
    %v118 = vld [vmem:[%s3] sm:$0x1]
    %v119 = vld [vmem:[%s4] sm:$0x1]
    %v120 = vld [vmem:[%s5] sm:$0xff]
    %v122 = vlaneseq
    %v123 = vshrl.u32 %v122, 7
    %v124 = vsub.s32 0, %v123
    %v125 = vrot.slane %v118, %v124
    %v131 = vunpack.c.l.b16 %v110
    %v132 = vunpack.c.l.b16 %v111
    %v133 = vunpack.c.l.b16 %v112
    %v134 = vunpack.c.l.b16 %v113
    %v135 = vpack.c.b16 %v132, %v131
    %v136 = vpack.c.b16 %v134, %v133
    %vm139 = vcmask 261120
    %v141 = vsel %vm139, %v107, 0
    %143 = vmatprep.subr.bf16.mxu0 0
    %144 = vmatpush1.bf16.msra.mxu0 %v135
    %145 = vmatprep.subr.bf16.mxu0 0
    %146 = vmatpush1.bf16.msra.mxu0 %v136
    %147 = vmatprep.subr.bf16.mxu0 0
    %148 = vmatpush1.bf16.msra.mxu0 0
    %149 = vmatprep.subr.bf16.mxu0 0
    %150 = vmatpush1.bf16.msra.mxu0 0
    %151 = vmatprep.subr.bf16.mxu0 0
    %152 = vmatpush1.bf16.msra.mxu0 0
    %153 = vmatprep.subr.bf16.mxu0 0
    %154 = vmatpush1.bf16.msra.mxu0 0
    %155 = vmatprep.subr.bf16.mxu0 0
    %156 = vmatpush1.bf16.msra.mxu0 0
    %157 = vmatprep.subr.bf16.mxu0 0
    %158 = vmatpush1.bf16.msra.mxu0 0
    %159 = vmatprep.subr.bf16.mxu0 0
    %160 = vmatpush1.bf16.msra.mxu0 0
    %161 = vmatprep.subr.bf16.mxu0 0
    %162 = vmatpush1.bf16.msra.mxu0 0
    %163 = vmatprep.subr.bf16.mxu0 0
    %164 = vmatpush1.bf16.msra.mxu0 0
    %165 = vmatprep.subr.bf16.mxu0 0
    %166 = vmatpush1.bf16.msra.mxu0 0
    %167 = vmatprep.subr.bf16.mxu0 0
    %168 = vmatpush1.bf16.msra.mxu0 0
    %169 = vmatprep.subr.bf16.mxu0 0
    %170 = vmatpush1.bf16.msra.mxu0 0
    %171 = vmatprep.subr.bf16.mxu0 0
    %172 = vmatpush1.bf16.msra.mxu0 0
    %173 = vmatprep.subr.bf16.mxu0 0
    %174 = vmatpush1.bf16.msra.mxu0 0
    %175 = vmatprep.mubr.bf16.mxu0 0
    %176 = vmatmul.mubr.bf16.gmra.mrb[0].mxu0 %v141
    %v177 = vpop.f32.mrb[0].mxu0
    %v178 = vadd.f32 %v125, %v177
    %v179 = vpop.f32.mrb[0].mxu0
    %v180 = vpop.f32.mrb[0].mxu0
    %v181 = vpop.f32.mrb[0].mxu0
    %182 = vdwg.mxu0
    %v184 = vlaneseq
    %v185 = vshrl.u32 %v184, 7
    %v186 = vsub.s32 0, %v185
    %v187 = vrot.slane %v119, %v186
    %v193 = vunpack.c.l.b16 %v114
    %v194 = vunpack.c.l.b16 %v115
    %v195 = vunpack.c.l.b16 %v116
    %v196 = vunpack.c.l.b16 %v117
    %v197 = vpack.c.b16 %v194, %v193
    %v198 = vpack.c.b16 %v196, %v195
    %v202 = vsel %vm139, %v109, 0
    %204 = vmatprep.subr.bf16.mxu0 0
    %205 = vmatpush1.bf16.msra.mxu0 %v197
    %206 = vmatprep.subr.bf16.mxu0 0
    %207 = vmatpush1.bf16.msra.mxu0 %v198
    %208 = vmatprep.subr.bf16.mxu0 0
    %209 = vmatpush1.bf16.msra.mxu0 0
    %210 = vmatprep.subr.bf16.mxu0 0
    %211 = vmatpush1.bf16.msra.mxu0 0
    %212 = vmatprep.subr.bf16.mxu0 0
    %213 = vmatpush1.bf16.msra.mxu0 0
    %214 = vmatprep.subr.bf16.mxu0 0
    %215 = vmatpush1.bf16.msra.mxu0 0
    %216 = vmatprep.subr.bf16.mxu0 0
    %217 = vmatpush1.bf16.msra.mxu0 0
    %218 = vmatprep.subr.bf16.mxu0 0
    %219 = vmatpush1.bf16.msra.mxu0 0
    %220 = vmatprep.subr.bf16.mxu0 0
    %221 = vmatpush1.bf16.msra.mxu0 0
    %222 = vmatprep.subr.bf16.mxu0 0
    %223 = vmatpush1.bf16.msra.mxu0 0
    %224 = vmatprep.subr.bf16.mxu0 0
    %225 = vmatpush1.bf16.msra.mxu0 0
    %226 = vmatprep.subr.bf16.mxu0 0
    %227 = vmatpush1.bf16.msra.mxu0 0
    %228 = vmatprep.subr.bf16.mxu0 0
    %229 = vmatpush1.bf16.msra.mxu0 0
    %230 = vmatprep.subr.bf16.mxu0 0
    %231 = vmatpush1.bf16.msra.mxu0 0
    %232 = vmatprep.subr.bf16.mxu0 0
    %233 = vmatpush1.bf16.msra.mxu0 0
    %234 = vmatprep.subr.bf16.mxu0 0
    %235 = vmatpush1.bf16.msra.mxu0 0
    %236 = vmatprep.mubr.bf16.mxu0 0
    %237 = vmatmul.mubr.bf16.gmra.mrb[0].mxu0 %v202
    %v238 = vpop.f32.mrb[0].mxu0
    %v239 = vadd.f32 %v187, %v238
    %v240 = vpop.f32.mrb[0].mxu0
    %v241 = vpop.f32.mrb[0].mxu0
    %v242 = vpop.f32.mrb[0].mxu0
    %243 = vdwg.mxu0
    %v244 = vrsqrt.pop %v239
    %v245 = vmul.f32 %v239, %v244
    %vm246 = vcmp.eq.f32.partialorder %v239, inf
    %v247 = vsel %vm246, %v239, %v245
    %vm248 = vcmp.eq.f32.partialorder %v239, 0.0
    %v249 = vand.u32 %v239, 2147483648
    %v250 = vsel %vm248, %v249, %v247
    %v251 = vmul.f32 %v120, %v250
    %v252 = vadd.f32 %v178, %v251
    %v253 = vmax.f32 %v252, 0.0
    %v254 = vpack.c.bf16 %v253, %v253
    %v255 = vmul.f32 %v253, %v253
    %v256 = vpack.c.bf16 %v255, %v255
    %v257 = vld [vmem:[#allocation8] sm:$0xf]
    %v258 = vld [vmem:[#allocation8 + $0x4] sm:$0xf]
    %v259 = vld [vmem:[#allocation8 + $0x8] sm:$0xf]
    %v260 = vld [vmem:[#allocation8 + $0xc] sm:$0xf]
    %v261 = vld [vmem:[#allocation8 + $0x10] sm:$0xf]
    %v262 = vld [vmem:[#allocation8 + $0x14] sm:$0xf]
    %v263 = vld [vmem:[#allocation8 + $0x18] sm:$0xf]
    %v264 = vld [vmem:[#allocation8 + $0x1c] sm:$0xf]
    %v265 = vld [vmem:[#allocation8 + $0x20] sm:$0xf]
    %v266 = vld [vmem:[#allocation8 + $0x24] sm:$0xf]
    %v267 = vld [vmem:[#allocation8 + $0x28] sm:$0xf]
    %v268 = vld [vmem:[#allocation8 + $0x2c] sm:$0xf]
    %v269 = vld [vmem:[#allocation8 + $0x30] sm:$0xf]
    %v270 = vld [vmem:[#allocation8 + $0x34] sm:$0xf]
    %v271 = vld [vmem:[#allocation8 + $0x38] sm:$0xf]
    %v272 = vld [vmem:[#allocation8 + $0x3c] sm:$0xf]
    %v273 = vld [vmem:[#allocation10] sm:$0xf]
    %v274 = vld [vmem:[#allocation10 + $0x4] sm:$0xf]
    %v275 = vld [vmem:[#allocation10 + $0x8] sm:$0xf]
    %v276 = vld [vmem:[#allocation10 + $0xc] sm:$0xf]
    %v277 = vld [vmem:[#allocation10 + $0x10] sm:$0xf]
    %v278 = vld [vmem:[#allocation10 + $0x14] sm:$0xf]
    %v279 = vld [vmem:[#allocation10 + $0x18] sm:$0xf]
    %v280 = vld [vmem:[#allocation10 + $0x1c] sm:$0xf]
    %v281 = vld [vmem:[#allocation10 + $0x20] sm:$0xf]
    %v282 = vld [vmem:[#allocation10 + $0x24] sm:$0xf]
    %v283 = vld [vmem:[#allocation10 + $0x28] sm:$0xf]
    %v284 = vld [vmem:[#allocation10 + $0x2c] sm:$0xf]
    %v285 = vld [vmem:[#allocation10 + $0x30] sm:$0xf]
    %v286 = vld [vmem:[#allocation10 + $0x34] sm:$0xf]
    %v287 = vld [vmem:[#allocation10 + $0x38] sm:$0xf]
    %v288 = vld [vmem:[#allocation10 + $0x3c] sm:$0xf]
    %v289 = vld [vmem:[%s8] sm:$0x1]
    %v290 = vld [vmem:[%s9] sm:$0x1]
    %v291 = vld [vmem:[%s10] sm:$0xff]
    %v293 = vlaneseq
    %v294 = vshrl.u32 %v293, 7
    %v295 = vsub.s32 0, %v294
    %v296 = vrot.slane %v289, %v295
    %v314 = vunpack.c.l.b16 %v257
    %v315 = vunpack.c.l.b16 %v258
    %v316 = vunpack.c.l.b16 %v259
    %v317 = vunpack.c.l.b16 %v260
    %v318 = vunpack.c.l.b16 %v261
    %v319 = vunpack.c.l.b16 %v262
    %v320 = vunpack.c.l.b16 %v263
    %v321 = vunpack.c.l.b16 %v264
    %v322 = vunpack.c.l.b16 %v265
    %v323 = vunpack.c.l.b16 %v266
    %v324 = vunpack.c.l.b16 %v267
    %v325 = vunpack.c.l.b16 %v268
    %v326 = vunpack.c.l.b16 %v269
    %v327 = vunpack.c.l.b16 %v270
    %v328 = vunpack.c.l.b16 %v271
    %v329 = vunpack.c.l.b16 %v272
    %v330 = vpack.c.b16 %v315, %v314
    %v331 = vpack.c.b16 %v317, %v316
    %v332 = vpack.c.b16 %v319, %v318
    %v333 = vpack.c.b16 %v321, %v320
    %v334 = vpack.c.b16 %v323, %v322
    %v335 = vpack.c.b16 %v325, %v324
    %v336 = vpack.c.b16 %v327, %v326
    %v337 = vpack.c.b16 %v329, %v328
    %346 = vmatprep.subr.bf16.mxu0 0
    %347 = vmatpush1.bf16.msra.mxu0 %v330
    %348 = vmatprep.subr.bf16.mxu0 0
    %349 = vmatpush1.bf16.msra.mxu0 %v331
    %350 = vmatprep.subr.bf16.mxu0 0
    %351 = vmatpush1.bf16.msra.mxu0 %v332
    %352 = vmatprep.subr.bf16.mxu0 0
    %353 = vmatpush1.bf16.msra.mxu0 %v333
    %354 = vmatprep.subr.bf16.mxu0 0
    %355 = vmatpush1.bf16.msra.mxu0 %v334
    %356 = vmatprep.subr.bf16.mxu0 0
    %357 = vmatpush1.bf16.msra.mxu0 %v335
    %358 = vmatprep.subr.bf16.mxu0 0
    %359 = vmatpush1.bf16.msra.mxu0 %v336
    %360 = vmatprep.subr.bf16.mxu0 0
    %361 = vmatpush1.bf16.msra.mxu0 %v337
    %362 = vmatprep.subr.bf16.mxu0 0
    %363 = vmatpush1.bf16.msra.mxu0 0
    %364 = vmatprep.subr.bf16.mxu0 0
    %365 = vmatpush1.bf16.msra.mxu0 0
    %366 = vmatprep.subr.bf16.mxu0 0
    %367 = vmatpush1.bf16.msra.mxu0 0
    %368 = vmatprep.subr.bf16.mxu0 0
    %369 = vmatpush1.bf16.msra.mxu0 0
    %370 = vmatprep.subr.bf16.mxu0 0
    %371 = vmatpush1.bf16.msra.mxu0 0
    %372 = vmatprep.subr.bf16.mxu0 0
    %373 = vmatpush1.bf16.msra.mxu0 0
    %374 = vmatprep.subr.bf16.mxu0 0
    %375 = vmatpush1.bf16.msra.mxu0 0
    %376 = vmatprep.subr.bf16.mxu0 0
    %377 = vmatpush1.bf16.msra.mxu0 0
    %378 = vmatprep.mubr.bf16.mxu0 0
    %379 = vmatmul.mubr.bf16.gmra.mrb[0].mxu0 %v254
    %v380 = vpop.f32.mrb[0].mxu0
    %v381 = vadd.f32 %v296, %v380
    %v382 = vpop.f32.mrb[0].mxu0
    %v383 = vpop.f32.mrb[0].mxu0
    %v384 = vpop.f32.mrb[0].mxu0
    %385 = vdwg.mxu0
    %v387 = vlaneseq
    %v388 = vshrl.u32 %v387, 7
    %v389 = vsub.s32 0, %v388
    %v390 = vrot.slane %v290, %v389
    %v408 = vunpack.c.l.b16 %v273
    %v409 = vunpack.c.l.b16 %v274
    %v410 = vunpack.c.l.b16 %v275
    %v411 = vunpack.c.l.b16 %v276
    %v412 = vunpack.c.l.b16 %v277
    %v413 = vunpack.c.l.b16 %v278
    %v414 = vunpack.c.l.b16 %v279
    %v415 = vunpack.c.l.b16 %v280
    %v416 = vunpack.c.l.b16 %v281
    %v417 = vunpack.c.l.b16 %v282
    %v418 = vunpack.c.l.b16 %v283
    %v419 = vunpack.c.l.b16 %v284
    %v420 = vunpack.c.l.b16 %v285
    %v421 = vunpack.c.l.b16 %v286
    %v422 = vunpack.c.l.b16 %v287
    %v423 = vunpack.c.l.b16 %v288
    %v424 = vpack.c.b16 %v409, %v408
    %v425 = vpack.c.b16 %v411, %v410
    %v426 = vpack.c.b16 %v413, %v412
    %v427 = vpack.c.b16 %v415, %v414
    %v428 = vpack.c.b16 %v417, %v416
    %v429 = vpack.c.b16 %v419, %v418
    %v430 = vpack.c.b16 %v421, %v420
    %v431 = vpack.c.b16 %v423, %v422
    %440 = vmatprep.subr.bf16.mxu0 0
    %441 = vmatpush1.bf16.msra.mxu0 %v424
    %442 = vmatprep.subr.bf16.mxu0 0
    %443 = vmatpush1.bf16.msra.mxu0 %v425
    %444 = vmatprep.subr.bf16.mxu0 0
    %445 = vmatpush1.bf16.msra.mxu0 %v426
    %446 = vmatprep.subr.bf16.mxu0 0
    %447 = vmatpush1.bf16.msra.mxu0 %v427
    %448 = vmatprep.subr.bf16.mxu0 0
    %449 = vmatpush1.bf16.msra.mxu0 %v428
    %450 = vmatprep.subr.bf16.mxu0 0
    %451 = vmatpush1.bf16.msra.mxu0 %v429
    %452 = vmatprep.subr.bf16.mxu0 0
    %453 = vmatpush1.bf16.msra.mxu0 %v430
    %454 = vmatprep.subr.bf16.mxu0 0
    %455 = vmatpush1.bf16.msra.mxu0 %v431
    %456 = vmatprep.subr.bf16.mxu0 0
    %457 = vmatpush1.bf16.msra.mxu0 0
    %458 = vmatprep.subr.bf16.mxu0 0
    %459 = vmatpush1.bf16.msra.mxu0 0
    %460 = vmatprep.subr.bf16.mxu0 0
    %461 = vmatpush1.bf16.msra.mxu0 0
    %462 = vmatprep.subr.bf16.mxu0 0
    %463 = vmatpush1.bf16.msra.mxu0 0
    %464 = vmatprep.subr.bf16.mxu0 0
    %465 = vmatpush1.bf16.msra.mxu0 0
    %466 = vmatprep.subr.bf16.mxu0 0
    %467 = vmatpush1.bf16.msra.mxu0 0
    %468 = vmatprep.subr.bf16.mxu0 0
    %469 = vmatpush1.bf16.msra.mxu0 0
    %470 = vmatprep.subr.bf16.mxu0 0
    %471 = vmatpush1.bf16.msra.mxu0 0
    %472 = vmatprep.mubr.bf16.mxu0 0
    %473 = vmatmul.mubr.bf16.gmra.mrb[0].mxu0 %v256
    %v474 = vpop.f32.mrb[0].mxu0
    %v475 = vadd.f32 %v390, %v474
    %v476 = vpop.f32.mrb[0].mxu0
    %v477 = vpop.f32.mrb[0].mxu0
    %v478 = vpop.f32.mrb[0].mxu0
    %479 = vdwg.mxu0
    %v480 = vrsqrt.pop %v475
    %v481 = vmul.f32 %v475, %v480
    %vm482 = vcmp.eq.f32.partialorder %v475, inf
    %v483 = vsel %vm482, %v475, %v481
    %vm484 = vcmp.eq.f32.partialorder %v475, 0.0
    %v485 = vand.u32 %v475, 2147483648
    %v486 = vsel %vm484, %v485, %v483
    %v487 = vmul.f32 %v291, %v486
    %v488 = vadd.f32 %v381, %v487
    %489 = vst [vmem:[#allocation11] sm:$0xff] %v488
    // Predicated region
    $region66: #{tpu_custom_call.1} parent=1 // pred_check
      _
    $region67: #{tpu_custom_call.1} parent=1 // pred_check_branch
      %491 = sbr.rel (0) target = $region69
    $region68: #{tpu_custom_call.1} parent=1 // pred_region
      %s493 = ssub.s32 128, 128
      %494 = vsyncadd [#allocation4], %s493
      %s496 = sshll.u32 [#allocation11], 4
      %s497 = int_to_ptr.vmem [resolvable:$true] %s496
      %499 = dma.vmem_to_hbm [thread:$0]  %s497, 128, %s11, [#allocation4]
    $region69: #{tpu_custom_call.1} parent=1 // pred_fallthru
      _
    // Predicated region
    $region70: #{tpu_custom_call.1} parent=1 // pred_check
      _
    $region71: #{tpu_custom_call.1} parent=1 // pred_check_branch
      %501 = sbr.rel (0) target = $region73
    $region72: #{tpu_custom_call.1} parent=1 // pred_region
      %502 = dma.done [#allocation4], 128
    $region73: #{tpu_custom_call.1} parent=1 // pred_fallthru
      _
    %503 = vsyncpa [#allocation3], 1
    %504 = vsyncpa [#allocation6], 1
    %505 = vsyncpa [#allocation9], 1
    %506 = vsyncpa [#allocation4], 1

</llo_original>
